<compile_context>
chip_gen: v6e
topology: v6e:2x2x1
jax: 0.10.0
libtpu: 0.0.40
codegen_flags: <defaults>
</compile_context>

<pallas_src>
import jax
import jax.numpy as jnp
from jax.experimental import pallas as pl
from jax.experimental.pallas import tpu as pltpu


def _round_up(x: int, m: int) -> int:
    return -(-x // m) * m


def _tpu_budget():
    """Per-generation (block_bytes, vmem_limit_bytes)."""
    try:
        kind = jax.devices()[0].device_kind.lower()
    except Exception:
        kind = ""
    if ("v5" in kind) or ("v6" in kind):
        # 128 MiB physical VMEM: 16 MiB blocks, generous scoped limit.
        return 16 * 1024 * 1024, 96 * 1024 * 1024
    # Conservative default (safe on v7x's 64 MiB per-TC VMEM and anywhere else):
    # 8 MiB blocks; in+out double-buffering = 32 MiB + headroom under 48 MiB.
    return 8 * 1024 * 1024, 48 * 1024 * 1024


_BLOCK_BYTES, _VMEM_LIMIT_BYTES = _tpu_budget()


def _gelu_kernel(x_ref, o_ref):
    # Exact erf-based GELU (nn.GELU() default), computed in f32.
    x = x_ref[...].astype(jnp.float32)
    inv_sqrt2 = 0.7071067811865476
    y = 0.5 * x * (1.0 + jax.lax.erf(x * inv_sqrt2))
    o_ref[...] = y.astype(o_ref.dtype)


@jax.jit
def gelu_pallas(x_nchw: jax.Array) -> jax.Array:
    """Equivalent to permute(0,2,3,1) -> GELU -> permute(0,3,1,2) = elementwise GELU."""
    total = x_nchw.size
    itemsize = jnp.dtype(x_nchw.dtype).itemsize
    sublane_mult = max(8, 32 // itemsize)        # 8 for f32, 16 for bf16, 32 for int8/fp8

    # Pick a lane width (multiple of 128) that divides the element count so the
    # pad/slice path almost never fires.
    lanes = 128
    for cand in (512, 256, 128):
        if total % cand == 0:
            lanes = cand
            break

    padded_total = _round_up(total, lanes)       # == total for most shapes
    rows = padded_total // lanes

    max_block_rows = max(
        sublane_mult,
        (_BLOCK_BYTES // (lanes * itemsize) // sublane_mult) * sublane_mult,
    )
    block_rows = min(max_block_rows, _round_up(rows, sublane_mult))

    # Prefer >= 2 grid steps so both v7x TensorCores get work (one extra ~0.35us
    # step elsewhere, negligible).
    if pl.cdiv(rows, block_rows) == 1 and rows > sublane_mult:
        block_rows = _round_up(-(-rows // 2), sublane_mult)

    x_flat = x_nchw.reshape(-1)
    if padded_total != total:                    # rare: total not a multiple of 128
        x_flat = jnp.pad(x_flat, (0, padded_total - total))
    x2d = x_flat.reshape(rows, lanes)

    out2d = pl.pallas_call(
        _gelu_kernel,
        out_shape=jax.ShapeDtypeStruct((rows, lanes), x_nchw.dtype),
        grid=(pl.cdiv(rows, block_rows),),       # ragged last block masked by Pallas
        in_specs=[pl.BlockSpec((block_rows, lanes), lambda i: (i, 0))],
        out_specs=pl.BlockSpec((block_rows, lanes), lambda i: (i, 0)),
        compiler_params=pltpu.CompilerParams(
            dimension_semantics=("parallel",),   # shards across cores (v7x megacore)
            vmem_limit_bytes=_VMEM_LIMIT_BYTES,
        ),
    )(x2d)

    out_flat = out2d.reshape(-1)
    if padded_total != total:
        out_flat = out_flat[:total]
    return out_flat.reshape(x_nchw.shape)


if __name__ == "__main__":
    key = jax.random.PRNGKey(0)
    x = jax.random.normal(key, (2, 4, 16, 16), dtype=jnp.float32)  # NCHW

    out = jax.block_until_ready(gelu_pallas(x))

    # Sanity check against pure-JAX reference (exact erf GELU, permutation-invariant).
    ref = jax.nn.gelu(x, approximate=False)
    assert out.shape == x.shape and out.dtype == x.dtype
    assert jnp.max(jnp.abs(out - ref)) < 1e-5

    print("KERNEL_OK")
</pallas_src>

<mosaic_0001>
module attributes {stable_mosaic.version = 11 : i64} {
  func.func @_gelu_kernel(%arg0: i32, %arg1: memref<8x512xf32, #tpu.memory_space<vmem>>, %arg2: memref<8x512xf32, #tpu.memory_space<vmem>>) attributes {dimension_semantics = [#tpu.dimension_semantics<parallel>], iteration_bounds = array<i64: 1>, scalar_prefetch = 0 : i64, scratch_operands = 0 : i64, tpu.core_type = #tpu.core_type<tc>, window_params = [{transform_indices = @transform_0, window_bounds = array<i64: 8, 512>}, {transform_indices = @transform_1, window_bounds = array<i64: 8, 512>}]} {
    %c0 = arith.constant 0 : index
    %c0_0 = arith.constant 0 : index
    %0 = vector.load %arg1[%c0, %c0_0] : memref<8x512xf32, #tpu.memory_space<vmem>>, vector<8x512xf32>
    %cst = arith.constant 5.000000e-01 : f32
    %1 = vector.broadcast %cst : f32 to vector<8x512xf32>
    %2 = arith.mulf %1, %0 : vector<8x512xf32>
    %cst_1 = arith.constant 0.707106769 : f32
    %3 = vector.broadcast %cst_1 : f32 to vector<8x512xf32>
    %4 = arith.mulf %0, %3 : vector<8x512xf32>
    %5 = math.erf %4 : vector<8x512xf32>
    %cst_2 = arith.constant 1.000000e+00 : f32
    %6 = vector.broadcast %cst_2 : f32 to vector<8x512xf32>
    %7 = arith.addf %6, %5 : vector<8x512xf32>
    %8 = arith.mulf %2, %7 : vector<8x512xf32>
    %c0_3 = arith.constant 0 : index
    %c0_4 = arith.constant 0 : index
    %9 = vector.load %arg2[%c0_3, %c0_4] : memref<8x512xf32, #tpu.memory_space<vmem>>, vector<8x512xf32>
    tpu.vector_store %arg2[%c0_3, %c0_4], %8 {strides = array<i32>} : memref<8x512xf32, #tpu.memory_space<vmem>>, vector<8x512xf32>,
    return
  }
  func.func @transform_0(%arg0: i32) -> (i32, i32) {
    %c0_i32 = arith.constant 0 : i32
    %c0_i32_0 = arith.constant 0 : i32
    return %arg0, %c0_i32 : i32, i32
  }
  func.func @transform_1(%arg0: i32) -> (i32, i32) {
    %c0_i32 = arith.constant 0 : i32
    %c0_i32_0 = arith.constant 0 : i32
    return %arg0, %c0_i32 : i32, i32
  }
}

</mosaic_0001>

<llo_original>
// kernel: gelu_pallas.1
$region0: #{gelu_pallas.1}
  #allocation0 [shape = 'u32[]', space=smem, size = 0x4, offset = 0x4, fixed_abs, tag = 'smem constant byte address 0x4 - core index']
  #allocation1 [shape = 'u32[144,128]{1,0:T(1,128)}', space=vmem, size = 0x12000, scoped, tag = 'internal scratch']
  %s0 = inlined_call_operand.vmem [shape: f32[4,512], index: 0, kind: input, shape index: {}]
  %s1 = inlined_call_operand.vmem [shape: f32[4,512], index: 1, kind: output, shape index: {}]
  %s2 = sld [smem:[#allocation0]]
  $region33: #{gelu_pallas.1} parent=0
    _
  %s4 = ssub.s32 1, %s2
  %s5 = scalar_select 0, %s4, %s2
  $region1: #{gelu_pallas.1} parent=0
    #allocation2 [shape = 'u8[16384]{0}', space=vmem, size = 0x4000, scoped, tag = 'output window, operand 0, single buffered']
    // Predicated region
    $region2: #{gelu_pallas.1} parent=1 // pred_check
      _
    $region3: #{gelu_pallas.1} parent=1 // pred_check_branch
      %7 = sbr.rel (0) target = $region5
    $region4: #{gelu_pallas.1} parent=1 // pred_region
      _
    $region5: #{gelu_pallas.1} parent=1 // pred_fallthru
      _
    %v8 = vld [vmem:[%s0] sm:$0xff]
    %v9 = vld [vmem:[%s0 + $0x8] sm:$0xff]
    %v10 = vld [vmem:[%s0 + $0x10] sm:$0xff]
    %v11 = vld [vmem:[%s0 + $0x18] sm:$0xff]
    %v12 = vmul.f32 %v8, 0.5
    %v13 = vmul.f32 %v9, 0.5
    %v14 = vmul.f32 %v10, 0.5
    %v15 = vmul.f32 %v11, 0.5
    %v16 = vmul.f32 %v8, 0.70710677
    %v17 = vmul.f32 %v9, 0.70710677
    %v18 = vmul.f32 %v10, 0.70710677
    %v19 = vmul.f32 %v11, 0.70710677
    %v20 = verf.f32.pop %v16
    %v21 = verf.f32.pop %v17
    %v22 = verf.f32.pop %v18
    %v23 = verf.f32.pop %v19
    %v24 = vadd.f32 %v20, 1.0
    %v25 = vadd.f32 %v21, 1.0
    %v26 = vadd.f32 %v22, 1.0
    %v27 = vadd.f32 %v23, 1.0
    %v28 = vmul.f32 %v12, %v24
    %v29 = vmul.f32 %v13, %v25
    %v30 = vmul.f32 %v14, %v26
    %v31 = vmul.f32 %v15, %v27
    %32 = vst [vmem:[#allocation2] sm:$0xff] %v28
    %33 = vst [vmem:[#allocation2 + $0x8] sm:$0xff] %v29
    %34 = vst [vmem:[#allocation2 + $0x10] sm:$0xff] %v30
    %35 = vst [vmem:[#allocation2 + $0x18] sm:$0xff] %v31
    // Predicated region
    $region6: #{gelu_pallas.1} parent=1 // pred_check
      _
    $region7: #{gelu_pallas.1} parent=1 // pred_check_branch
      %37 = sbr.rel (0) target = $region9
    $region8: #{gelu_pallas.1} parent=1 // pred_region
      // Predicated region
      $region10: #{gelu_pallas.1} parent=8 // pred_check
        _
      $region11: #{gelu_pallas.1} parent=8 // pred_check_branch
        %39 = sbr.rel (0) target = $region13
      $region12: #{gelu_pallas.1} parent=8 // pred_region
        // Predicated region
        $region14: #{gelu_pallas.1} parent=12 // pred_check
          _
        $region15: #{gelu_pallas.1} parent=12 // pred_check_branch
          %41 = sbr.rel (0) target = $region17
        $region16: #{gelu_pallas.1} parent=12 // pred_region
          loop: start=0, step=1, limit=1
          $region18: #{gelu_pallas.1} parent=16 // loop_pre_header
            _
          $region19: #{gelu_pallas.1} parent=16 // loop_header
            %s43 = sphi 0, %s47
            %p44 = scmp.ge.s32.totalorder %s43, 1
            %s48 = sphi [#allocation2], [#allocation2]
            %s49 = sphi %s1, %s1
          $region20: #{gelu_pallas.1} parent=16 // loop_header_branch
            %46 = sbr.rel (%p44) target = $region24
          $region21: #{gelu_pallas.1} parent=16 // loop_body
            %v50 = vld [vmem:[%s48] sm:$0xff]
            %51 = vst [vmem:[%s49] sm:$0xff] %v50
            %v52 = vld [vmem:[%s48 + $0x8] sm:$0xff]
            %53 = vst [vmem:[%s49 + $0x8] sm:$0xff] %v52
          $region22: #{gelu_pallas.1} parent=16 // loop_footer
            %s47 = sadd.s32 1, %s43
          $region23: #{gelu_pallas.1} parent=16 // loop_footer_branch
            %42 = sbr.rel target = $region19
          $region24: #{gelu_pallas.1} parent=16 // loop_exit
            _
        $region17: #{gelu_pallas.1} parent=12 // pred_fallthru
          _
        // Predicated region
        $region25: #{gelu_pallas.1} parent=12 // pred_check
          _
        $region26: #{gelu_pallas.1} parent=12 // pred_check_branch
          %55 = sbr.rel target = $region28
        $region27: #{gelu_pallas.1} parent=12 // pred_region
          _
        $region28: #{gelu_pallas.1} parent=12 // pred_fallthru
          _
      $region13: #{gelu_pallas.1} parent=8 // pred_fallthru
        _
      %56 = vnop
    $region9: #{gelu_pallas.1} parent=1 // pred_fallthru
      _
    // Predicated region
    $region29: #{gelu_pallas.1} parent=1 // pred_check
      _
    $region30: #{gelu_pallas.1} parent=1 // pred_check_branch
      %58 = sbr.rel (0) target = $region32
    $region31: #{gelu_pallas.1} parent=1 // pred_region
      _
    $region32: #{gelu_pallas.1} parent=1 // pred_fallthru
      _

</llo_original>
